<compile_context>
chip_gen: v6e
topology: v6e:2x2x1
jax: 0.10.0
libtpu: 0.0.40
codegen_flags: <defaults>
</compile_context>

<pallas_src>
import functools

import numpy as np
import jax
import jax.numpy as jnp
from jax import lax
from jax.experimental import pallas as pl
from jax.experimental.pallas import tpu as pltpu

LANE = 128  # TPU lane width; every channel-like dim is padded to this.

# ------------------------------------------------------------------------------------
# Module configuration (small parameterization, consistent with CNN.__init__).
# ------------------------------------------------------------------------------------
NUM_FILTERS = [8, 16, 32]
KERNEL_SIZE = [3, 3, 3]
NUM_DENSE = [64]
NUM_CLASSES = 10
PADDING = 1
IMG_SIZE = 16
IN_CH = 3
BATCH = 2
FLATTENED = NUM_FILTERS[-1] * (IMG_SIZE // 8) * (IMG_SIZE // 8)   # 32 * 2 * 2 = 128


# ------------------------------------------------------------------------------------
# 2x2-pool partner max (XLU roll + VPU max) and a one-time probe of the roll direction.
# ------------------------------------------------------------------------------------
def _pool_partner_max(v):
    """max(v[i], v[i +/- 1]) along the sublane axis via one XLU roll + one VPU max.

    Whether the partner is row i+1 or i-1 depends on the backend's rotate direction;
    the 0/1 selection matrices / feature row indices only ever read the parity rows
    where the pair is the correct (2w, 2w+1) pool pair, as fixed by _probe_roll_parity.
    """
    return jnp.maximum(v, pltpu.roll(v, shift=v.shape[0] - 1, axis=0))


def _roll_probe_kernel(x_ref, o_ref):
    o_ref[...] = _pool_partner_max(x_ref[...])


def _probe_roll_parity():
    """Returns 0 if row i pairs with row i+1 (np.roll semantics), else 1."""
    x = jnp.broadcast_to(jnp.arange(8, dtype=jnp.float32)[:, None], (8, LANE))
    out = pl.pallas_call(
        _roll_probe_kernel,
        out_shape=jax.ShapeDtypeStruct((8, LANE), jnp.float32),
    )(x)
    first = float(out[0, 0])
    assert first in (1.0, 7.0), f"unexpected roll semantics: {first}"
    return 0 if first == 1.0 else 1


# ------------------------------------------------------------------------------------
# Fused CNN kernel: one grid step == one image, everything resident in VMEM.
# ------------------------------------------------------------------------------------
def _cnn_kernel(patches_ref, w1_ref, b1_ref, s1_ref,
                w2_ref, b2_ref, s2_ref,
                w3_ref, b3_ref,
                fw1_ref, fb1_ref, fw2_ref, fb2_ref,
                out_ref, a2_scr, a3_scr, h3_scr, *, parity):
    f32, bf16 = jnp.float32, jnp.bfloat16

    def bias_relu_vpool(acc, b_ref, hc, wc):
        # acc: (hc*wc, LANE) conv rows in (h, w) order -> bias + ReLU + vertical 2-max.
        acc = jnp.maximum(acc + b_ref[...], 0.0)
        acc = acc.reshape(hc // 2, 2, wc, LANE)
        return jnp.maximum(acc[:, 0], acc[:, 1]).reshape((hc // 2) * wc, LANE)

    def conv9(src_ref, w_ref, hc, wc):
        # 3x3 conv: 9 accumulating (hc*wc,128)x(128,128) bf16 MXU matmuls over shifted
        # windows of the zero-padded, lane-padded NHWC scratch buffer.
        acc = jnp.zeros((hc * wc, LANE), f32)
        for dy in range(3):
            for dx in range(3):
                tap = src_ref[dy:dy + hc, dx:dx + wc, :].reshape(hc * wc, LANE)
                acc = acc + jnp.dot(tap, w_ref[dy * 3 + dx],
                                    preferred_element_type=f32)
        return acc

    # ---- layer 1: taps pre-packed into K (im2col) -> a single 256x128x128 matmul ----
    acc1 = jnp.dot(patches_ref[...], w1_ref[...], preferred_element_type=f32)
    h1 = _pool_partner_max(bias_relu_vpool(acc1, b1_ref, 16, 16))           # (128,128)
    a2 = jnp.dot(s1_ref[...], h1.astype(bf16), preferred_element_type=f32)  # (160,128)
    a2_scr[...] = a2.astype(bf16).reshape(10, 16, LANE)

    # ---- layer 2: 8x8 conv output -> 2x2-pooled 4x4, re-padded for layer 3 ----------
    h2 = _pool_partner_max(
        bias_relu_vpool(conv9(a2_scr, w2_ref, 8, 8), b2_ref, 8, 8))         # (32,128)
    a3 = jnp.dot(s2_ref[...], h2.astype(bf16), preferred_element_type=f32)  # (96,128)
    a3_scr[...] = a3.astype(bf16).reshape(6, 16, LANE)

    # ---- layer 3: 4x4 conv output (8 cols computed, 4 real) -> pooled 2x2 features --
    h3_scr[...] = _pool_partner_max(
        bias_relu_vpool(conv9(a3_scr, w3_ref, 4, 8), b3_ref, 4, 8))         # (16,128)

    # ---- dense head: relu(flat @ fc1 + b) @ fc2 + b -----------------------------------
    # Final pool selection + (h, w, c) flatten permutation are folded into fw1's layout.
    h = jnp.zeros((1, LANE), f32)
    for r, (hh, ww) in enumerate(((0, 0), (0, 1), (1, 0), (1, 1))):
        row = hh * 8 + 2 * ww + parity                   # pooled feature row at (hh, ww)
        h = h + jnp.dot(h3_scr[row:row + 1, :].astype(bf16), fw1_ref[r],
                        preferred_element_type=f32)
    h = jnp.maximum(h + fb1_ref[...], 0.0).astype(bf16)
    logits = jnp.dot(h, fw2_ref[...], preferred_element_type=f32) + fb2_ref[...]
    out_ref[...] = jnp.broadcast_to(logits, (8, LANE))   # lane+sublane-dense f32 store


# ------------------------------------------------------------------------------------
# pallas_call wrapper
# ------------------------------------------------------------------------------------
def _full_spec(shape):
    zeros = (0,) * len(shape)
    return pl.BlockSpec(shape, lambda i, _z=zeros: _z)


def cnn_pallas(patches, p, parity):
    n = patches.shape[0]
    weights = (p["w1"], p["b1"], p["s1"], p["w2"], p["b2"], p["s2"],
               p["w3"], p["b3"], p["fw1"], p["fb1"], p["fw2"], p["fb2"])
    grid_spec = pltpu.PrefetchScalarGridSpec(
        num_scalar_prefetch=0,
        grid=(n,),
        in_specs=[pl.BlockSpec((None, IMG_SIZE * IMG_SIZE, LANE),
                               lambda i: (i, 0, 0))]            # per-image patch block
                 + [_full_spec(w.shape) for w in weights],      # weights: whole array
        out_specs=pl.BlockSpec((None, 8, LANE), lambda i: (i, 0, 0)),
        scratch_shapes=[
            pltpu.VMEM((10, 16, LANE), jnp.bfloat16),   # zero-padded layer-2 input
            pltpu.VMEM((6, 16, LANE), jnp.bfloat16),    # zero-padded layer-3 input
            pltpu.VMEM((16, LANE), jnp.float32),        # layer-3 pooled-pair rows
        ],
    )
    return pl.pallas_call(
        functools.partial(_cnn_kernel, parity=parity),
        out_shape=jax.ShapeDtypeStruct((n, 8, LANE), jnp.float32),
        grid_spec=grid_spec,
        compiler_params=pltpu.CompilerParams(dimension_semantics=("parallel",)),
    )(patches, *weights)


def make_cnn_forward(parity):
    @jax.jit
    def cnn_forward(x_nchw, params):
        """Forward pass of CNN (use_batchnorm=False, use_dropout=False -> Identity)."""
        n = x_nchw.shape[0]
        x = jnp.transpose(x_nchw, (0, 2, 3, 1))                           # NCHW -> NHWC
        xp = jnp.pad(x, ((0, 0), (PADDING, PADDING), (PADDING, PADDING), (0, 0)))
        # im2col for layer 1: pack the 3x3x3 taps into the contraction dim (27 -> 128).
        taps = [xp[:, dy:dy + IMG_SIZE, dx:dx + IMG_SIZE, :]
                for dy in range(3) for dx in range(3)]
        patches = jnp.concatenate(taps, axis=-1)                          # (N,16,16,27)
        patches = jnp.pad(
            patches, ((0, 0), (0, 0), (0, 0), (0, LANE - patches.shape[-1])))
        patches = patches.reshape(n, IMG_SIZE * IMG_SIZE, LANE).astype(jnp.bfloat16)
        out = cnn_pallas(patches, params, parity)                         # (N, 8, 128)
        return out[:, 0, :NUM_CLASSES]
    return cnn_forward


# ------------------------------------------------------------------------------------
# Parameter construction (mirrors the module's init: kaiming_normal(fan_out) convs,
# xavier_normal linears, zero biases), plus constant pooling-selection matrices.
# ------------------------------------------------------------------------------------
def _sel_pad(hq_in, wc_in, wq_real, hp_out, wpad_out, parity):
    """0/1 matrix (hp_out*wpad_out, hq_in*wc_in): row (h+1)*wpad_out+(w+1) picks the
    pool-partner-maxed row h*wc_in + 2*w + parity (the horizontal 2x2-pool result),
    placing it at its (+1,+1) halo position inside the next layer's zero-padded input."""
    sel = np.zeros((hp_out * wpad_out, hq_in * wc_in), np.float32)
    for h in range(hq_in):
        for w in range(wq_real):
            sel[(h + 1) * wpad_out + (w + 1), h * wc_in + 2 * w + parity] = 1.0
    return jnp.asarray(sel, jnp.bfloat16)


def init_params(key, parity):
    assert (NUM_FILTERS, KERNEL_SIZE, NUM_DENSE, PADDING, IMG_SIZE, IN_CH) == \
        ([8, 16, 32], [3, 3, 3], [64], 1, 16, 3), "kernel is specialized to this config"
    p = {}
    ref_convs = []
    ws = []
    cins = [IN_CH] + NUM_FILTERS[:-1]
    for i, (cin, cout, k) in enumerate(zip(cins, NUM_FILTERS, KERNEL_SIZE), start=1):
        key, wk = jax.random.split(key)
        std = (2.0 / (cout * k * k)) ** 0.5             # kaiming_normal, fan_out, relu
        w = (std * jax.random.normal(wk, (k, k, cin, cout), jnp.float32)
             ).astype(jnp.bfloat16)
        ws.append(w)
        p[f"b{i}"] = jnp.zeros((1, LANE), jnp.float32)   # nn.init.constant_(bias, 0)
        ref_convs.append((w.astype(jnp.float32), jnp.zeros((cout,), jnp.float32)))

    # layer 1: taps packed into the contraction dim, lane order (dy, dx, cin).
    w1 = ws[0].reshape(9 * IN_CH, NUM_FILTERS[0])
    p["w1"] = jnp.zeros((LANE, LANE), jnp.bfloat16).at[:9 * IN_CH,
                                                       :NUM_FILTERS[0]].set(w1)
    # layers 2/3: one (cin_pad, cout_pad) matrix per tap.
    for i, w in ((2, ws[1]), (3, ws[2])):
        cin, cout = w.shape[2], w.shape[3]
        wp = jnp.zeros((3, 3, LANE, LANE), jnp.bfloat16).at[:, :, :cin, :cout].set(w)
        p[f"w{i}"] = wp.reshape(9, LANE, LANE)

    # single-parity pooling / halo re-padding selection matrices
    p["s1"] = _sel_pad(hq_in=8, wc_in=16, wq_real=8, hp_out=10, wpad_out=16,
                       parity=parity)
    p["s2"] = _sel_pad(hq_in=4, wc_in=8, wq_real=4, hp_out=6, wpad_out=16,
                       parity=parity)

    # Dense head.  Pooled features arrive in (h, w, c) order, so fc1's rows are built
    # in that order directly (the flatten permutation is folded into the weight layout).
    d1 = NUM_DENSE[0]
    key, k1, k2 = jax.random.split(key, 3)
    fc1 = ((2.0 / (FLATTENED + d1)) ** 0.5 *                       # xavier_normal
           jax.random.normal(k1, (FLATTENED, d1), jnp.float32)).astype(jnp.bfloat16)
    fc2 = ((2.0 / (d1 + NUM_CLASSES)) ** 0.5 *
           jax.random.normal(k2, (d1, NUM_CLASSES), jnp.float32)).astype(jnp.bfloat16)

    cl = NUM_FILTERS[-1]
    p["fw1"] = jnp.zeros((4, LANE, LANE), jnp.bfloat16).at[:, :cl, :d1].set(
        fc1.reshape(4, cl, d1))
    p["fb1"] = jnp.zeros((1, LANE), jnp.float32)
    p["fw2"] = jnp.zeros((LANE, LANE), jnp.bfloat16).at[:d1, :NUM_CLASSES].set(fc2)
    p["fb2"] = jnp.zeros((1, LANE), jnp.float32)

    ref = {"convs": ref_convs,
           "fcs": (fc1.astype(jnp.float32), fc2.astype(jnp.float32))}
    return p, ref


# ------------------------------------------------------------------------------------
# Plain-JAX (XLA) reference with the same bf16-rounded parameters / activations,
# used only as a numerical self-check.
# ------------------------------------------------------------------------------------
def reference_forward(x_nchw, ref):
    def q(v):  # bf16 rounding to match the kernel's inter-layer precision
        return v.astype(jnp.bfloat16).astype(jnp.float32)

    x = q(jnp.transpose(x_nchw, (0, 2, 3, 1)))
    for w_hwio, b in ref["convs"]:
        x = lax.conv_general_dilated(x, w_hwio, (1, 1),
                                     [(PADDING, PADDING), (PADDING, PADDING)],
                                     dimension_numbers=("NHWC", "HWIO", "NHWC"))
        x = jnp.maximum(x + b, 0.0)
        x = lax.reduce_window(x, -jnp.inf, lax.max, (1, 2, 2, 1), (1, 2, 2, 1), "VALID")
        x = q(x)
    x = x.reshape(x.shape[0], -1)                 # (h, w, c)-ordered flatten (see init)
    fc1, fc2 = ref["fcs"]
    x = q(jnp.maximum(x @ fc1, 0.0))
    return x @ fc2


# ------------------------------------------------------------------------------------
if __name__ == "__main__":
    parity = _probe_roll_parity()                 # one-time roll-direction probe
    key = jax.random.PRNGKey(0)
    key, pkey, xkey = jax.random.split(key, 3)
    params, ref_params = init_params(pkey, parity)
    x = jax.random.normal(xkey, (BATCH, IN_CH, IMG_SIZE, IMG_SIZE), jnp.float32)

    cnn_forward = make_cnn_forward(parity)
    logits = jax.block_until_ready(cnn_forward(x, params))
    assert logits.shape == (BATCH, NUM_CLASSES), logits.shape
    assert logits.dtype == jnp.float32
    assert bool(jnp.all(jnp.isfinite(logits)))

    expected = reference_forward(x, ref_params)
    assert bool(jnp.allclose(logits, expected, atol=5e-2, rtol=5e-2)), (logits, expected)

    print("KERNEL_OK")
</pallas_src>

<mosaic_0001>
module attributes {stable_mosaic.version = 11 : i64} {
  func.func @_roll_probe_kernel(%arg0: memref<8x128xf32, #tpu.memory_space<vmem>>, %arg1: memref<8x128xf32, #tpu.memory_space<vmem>>) attributes {dimension_semantics = [], scalar_prefetch = 0 : i64, scratch_operands = 0 : i64, tpu.core_type = #tpu.core_type<tc>} {
    %c0 = arith.constant 0 : index
    %c0_0 = arith.constant 0 : index
    %0 = vector.load %arg0[%c0, %c0_0] : memref<8x128xf32, #tpu.memory_space<vmem>>, vector<8x128xf32>
    %c7_i32 = arith.constant 7 : i32
    %1 = tpu.dynamic_rotate %0 by %c7_i32 dim 0 : vector<8x128xf32>, i32 -> vector<8x128xf32>
    %2 = arith.maximumf %0, %1 : vector<8x128xf32>
    %c0_1 = arith.constant 0 : index
    %c0_2 = arith.constant 0 : index
    %3 = vector.load %arg1[%c0_1, %c0_2] : memref<8x128xf32, #tpu.memory_space<vmem>>, vector<8x128xf32>
    tpu.vector_store %arg1[%c0_1, %c0_2], %2 {strides = array<i32>} : memref<8x128xf32, #tpu.memory_space<vmem>>, vector<8x128xf32>,
    return
  }
}

</mosaic_0001>

<llo_original>
// kernel: tpu_custom_call.1
$region0: #{tpu_custom_call.1}
  #allocation0 [shape = 'u32[]', space=smem, size = 0x4, offset = 0x4, fixed_abs, tag = 'smem constant byte address 0x4 - core index']
  #allocation1 [shape = 'u32[144,128]{1,0:T(1,128)}', space=vmem, size = 0x12000, scoped, tag = 'internal scratch']
  %s0 = inlined_call_operand.hbm [shape: f32[8,128], index: 0, kind: input, shape index: {}]
  %s1 = inlined_call_operand.hbm [shape: f32[8,128], index: 1, kind: output, shape index: {}]
  %s2 = sld [smem:[#allocation0]]
  $region18: #{tpu_custom_call.1} parent=0
    _
  %s4 = ssub.s32 1, %s2
  %s5 = scalar_select 0, %s4, %s2
  $region1: #{tpu_custom_call.1} parent=0
    #allocation2 [shape = 'u8[4096]{0}', space=vmem, size = 0x1000, scoped, tag = 'input window, operand 0, single buffered']
    #allocation3 [shape = 's32[1]{0}', space=sflag, size = 0x4, scoped, tag = 'scoped memory for tpu_custom_call.1']
    #allocation4 [shape = 's32[1]{0}', space=sflag, size = 0x4, scoped, tag = 'scoped memory for tpu_custom_call.1']
    #allocation5 [shape = 'u8[4096]{0}', space=vmem, size = 0x1000, scoped, tag = 'output window, operand 0, single buffered']
    %6 = vsyncpa [#allocation3], 0
    %7 = vsyncpa [#allocation4], 0
    // Predicated region
    $region2: #{tpu_custom_call.1} parent=1 // pred_check
      _
    $region3: #{tpu_custom_call.1} parent=1 // pred_check_branch
      %9 = sbr.rel (0) target = $region5
    $region4: #{tpu_custom_call.1} parent=1 // pred_region
      %s11 = ssub.s32 128, 128
      %12 = vsyncadd [#allocation3], %s11
      %s14 = sshll.u32 [#allocation2], 4
      %s15 = int_to_ptr.vmem [resolvable:$true] %s14
      %17 = dma.hbm_to_vmem [thread:$0]  %s0, 128, %s15, [#allocation3]
    $region5: #{tpu_custom_call.1} parent=1 // pred_fallthru
      _
    // Predicated region
    $region6: #{tpu_custom_call.1} parent=1 // pred_check
      _
    $region7: #{tpu_custom_call.1} parent=1 // pred_check_branch
      %19 = sbr.rel (0) target = $region9
    $region8: #{tpu_custom_call.1} parent=1 // pred_region
      %20 = dma.done [#allocation3], 128
    $region9: #{tpu_custom_call.1} parent=1 // pred_fallthru
      _
    %v21 = vld [vmem:[#allocation2] sm:$0xff]
    %v22 = vrot.slane %v21, 1
    %v23 = vmax.f32 %v21, %v22
    %24 = vst [vmem:[#allocation5] sm:$0xff] %v23
    // Predicated region
    $region10: #{tpu_custom_call.1} parent=1 // pred_check
      _
    $region11: #{tpu_custom_call.1} parent=1 // pred_check_branch
      %26 = sbr.rel (0) target = $region13
    $region12: #{tpu_custom_call.1} parent=1 // pred_region
      %s28 = ssub.s32 128, 128
      %29 = vsyncadd [#allocation4], %s28
      %s31 = sshll.u32 [#allocation5], 4
      %s32 = int_to_ptr.vmem [resolvable:$true] %s31
      %34 = dma.vmem_to_hbm [thread:$0]  %s32, 128, %s1, [#allocation4]
    $region13: #{tpu_custom_call.1} parent=1 // pred_fallthru
      _
    // Predicated region
    $region14: #{tpu_custom_call.1} parent=1 // pred_check
      _
    $region15: #{tpu_custom_call.1} parent=1 // pred_check_branch
      %36 = sbr.rel (0) target = $region17
    $region16: #{tpu_custom_call.1} parent=1 // pred_region
      %37 = dma.done [#allocation4], 128
    $region17: #{tpu_custom_call.1} parent=1 // pred_fallthru
      _
    %38 = vsyncpa [#allocation3], 1
    %39 = vsyncpa [#allocation4], 1

</llo_original>
